<compile_context>
chip_gen: v5e
topology: v5e:2x2
jax: 0.10.0
libtpu: 0.0.40
codegen_flags: <defaults>
</compile_context>

<pallas_src>
import jax
import jax.numpy as jnp
import numpy as np
from jax.experimental import pallas as pl
from jax.experimental.pallas import tpu as pltpu

LANE = 128
SUBLANE = 8


def _round_up(x, m):
    return ((x + m - 1) // m) * m


def _vmem_capacity_bytes():
    try:
        cap = getattr(pltpu.get_tpu_info(), "vmem_capacity_bytes", None)
        if cap:
            return int(cap)
    except Exception:
        pass
    return 64 * 1024 * 1024  # conservative fallback (v7x per-TensorCore VMEM)


def _downsample_kernel(u_ref, w_ref, b_ref, o_ref):
    """One (batch, row-tile) step: a single fused-tap matmul + bias.

    u_ref : (1, TM, 9*Cp)   im2col rows for TM output pixels
    w_ref : (9*Cp, Cop)     fused 3x3 tap weights (same tap order as u)
    b_ref : (1, Cop) f32    bias
    o_ref : (1, TM, Cop)    output rows
    """
    acc = jnp.dot(u_ref[0], w_ref[...], preferred_element_type=jnp.float32)
    acc = acc + b_ref[...]            # (1, Cop) broadcasts over (TM, Cop)
    o_ref[0] = acc.astype(o_ref.dtype)


def downsample(x_nchw, weight_oihw, bias, *, m_tile=None,
               use_bf16_matmul=False, out_nhwc=False):
    """Equivalent of Downsample.forward. x_nchw: (N, Cin, H, W)."""
    N, Cin, H, W = x_nchw.shape
    Cout = weight_oihw.shape[0]
    # PyTorch: pad (right, bottom) by 1 zero, then 3x3 conv, stride 2, VALID.
    Ho = (H - 2) // 2 + 1
    Wo = (W - 2) // 2 + 1
    M = Ho * Wo

    Cp = _round_up(Cin, LANE)          # lane-dense input channels
    Cop = _round_up(Cout, LANE)        # lane-dense output channels
    K = 9 * Cp                         # fused im2col reduction dim

    compute_dtype = jnp.bfloat16 if use_bf16_matmul else jnp.float32
    in_itemsize = jnp.dtype(compute_dtype).itemsize
    out_dtype = x_nchw.dtype
    out_itemsize = jnp.dtype(out_dtype).itemsize

    # ---- tile-size selection (weight-aware VMEM budget) ----------------------
    vmem = _vmem_capacity_bytes()                     # 64 MiB/TC v7x, 128 MiB v5e/v6e
    vmem_limit = max(32 * 1024 * 1024, int(vmem * 0.7))
    weight_bytes = K * Cop * in_itemsize
    resident = 2 * weight_bytes + 2 * Cop * 4         # weights + bias (assume 2 buffers)
    per_row = 2 * K * in_itemsize + 2 * Cop * out_itemsize  # double-buffered in/out rows
    if m_tile is not None:
        TM = max(SUBLANE, _round_up(int(m_tile), SUBLANE))
    else:
        budget = int(vmem_limit * 0.8) - resident
        TM = max(SUBLANE, budget // per_row) if budget > 0 else SUBLANE
        TM = min(TM, 4096)                            # ~2K-4K MXU M-rows per step
    TM = min(TM, _round_up(M, SUBLANE))
    if TM >= LANE:
        TM = (TM // LANE) * LANE
    else:
        TM = max(SUBLANE, (TM // SUBLANE) * SUBLANE)
    if m_tile is None:
        # Megacore (v7x, 2 TCs): keep at least 2 grid steps so no core idles.
        tiles_needed = max(1, int(pl.cdiv(2, N)))
        if tiles_needed > 1 and M > SUBLANE:
            TM = min(TM, _round_up(int(pl.cdiv(M, tiles_needed)), SUBLANE))
    n_m_tiles = int(pl.cdiv(M, TM))
    M_pad = n_m_tiles * TM

    # ---- plain-XLA glue: layout, zero pad, direct strided im2col -------------
    x = jnp.transpose(x_nchw, (0, 2, 3, 1))                         # NHWC
    pad_h = 2 * Ho + 1 - H                                          # 1 (H even) / 0
    pad_w = 2 * Wo + 1 - W
    x = jnp.pad(x, ((0, 0), (0, pad_h), (0, pad_w), (0, Cp - Cin)))
    x = x.astype(compute_dtype)
    taps = [x[:, kh:kh + 2 * Ho - 1:2, kw:kw + 2 * Wo - 1:2, :]
            for kh in range(3) for kw in range(3)]                  # 9 x (N,Ho,Wo,Cp)
    u = jnp.concatenate(taps, axis=-1).reshape(N, M, K)             # (N, Ho*Wo, 9*Cp)
    u = jnp.pad(u, ((0, 0), (0, M_pad - M), (0, 0)))

    # Fused tap weights: HWIO flattened in the same (kh, kw, c) order as u.
    w = jnp.transpose(weight_oihw, (2, 3, 1, 0))                    # (3,3,Cin,Cout)
    w = jnp.pad(w, ((0, 0), (0, 0), (0, Cp - Cin), (0, Cop - Cout)))
    w_all = w.reshape(K, Cop).astype(compute_dtype)
    b_k = jnp.pad(bias, (0, Cop - Cout)).astype(jnp.float32).reshape(1, Cop)

    out_flat = pl.pallas_call(
        _downsample_kernel,
        out_shape=jax.ShapeDtypeStruct((N, M_pad, Cop), out_dtype),
        grid_spec=pltpu.PrefetchScalarGridSpec(
            num_scalar_prefetch=0,
            grid=(N, n_m_tiles),
            in_specs=[
                pl.BlockSpec((1, TM, K), lambda n, t: (n, t, 0)),
                # Constant index maps: fetched once, stay resident across steps.
                # (A single-buffered pipeline_mode would reclaim the second
                #  weight buffer; left at the default for compile safety and
                #  accounted for in the VMEM budget above.)
                pl.BlockSpec((K, Cop), lambda n, t: (0, 0)),
                pl.BlockSpec((1, Cop), lambda n, t: (0, 0)),
            ],
            out_specs=pl.BlockSpec((1, TM, Cop), lambda n, t: (n, t, 0)),
        ),
        compiler_params=pltpu.CompilerParams(
            dimension_semantics=("parallel", "parallel"),
            vmem_limit_bytes=int(vmem_limit)),
    )(u, w_all, b_k)

    out = out_flat[:, :M, :Cout].reshape(N, Ho, Wo, Cout)
    if out_nhwc:
        return out
    return jnp.transpose(out, (0, 3, 1, 2))                         # NCHW


def reference(x_nchw, weight_oihw, bias):
    xp = jnp.pad(x_nchw, ((0, 0), (0, 0), (0, 1), (0, 1)))
    out = jax.lax.conv_general_dilated(
        xp, weight_oihw, window_strides=(2, 2), padding="VALID",
        dimension_numbers=("NCHW", "OIHW", "NCHW"),
        precision=jax.lax.Precision.HIGHEST)
    return out + bias.reshape(1, -1, 1, 1)


if __name__ == "__main__":
    key = jax.random.PRNGKey(0)
    k1, k2, k3 = jax.random.split(key, 3)

    N, C, H, W = 2, 4, 16, 16
    x = jax.random.normal(k1, (N, C, H, W), dtype=jnp.float32)
    weight = 0.1 * jax.random.normal(k2, (C, C, 3, 3), dtype=jnp.float32)
    bias = 0.1 * jax.random.normal(k3, (C,), dtype=jnp.float32)

    ref = reference(x, weight, bias)

    # 1) auto tile (VMEM-budget driven), f32 operand path.
    out = jax.block_until_ready(downsample(x, weight, bias))
    assert out.shape == (N, C, 8, 8), out.shape
    np.testing.assert_allclose(np.asarray(out), np.asarray(ref),
                               atol=2e-3, rtol=2e-3)

    # 2) explicit multi-tile path (2 row tiles per batch) -> grid (2, 2).
    out2 = jax.block_until_ready(downsample(x, weight, bias, m_tile=32))
    np.testing.assert_allclose(np.asarray(out2), np.asarray(ref),
                               atol=2e-3, rtol=2e-3)

    # 3) bf16-operand MXU path (recommended fast path on v5e/v6e/v7x), f32 acc.
    out3 = jax.block_until_ready(
        downsample(x, weight, bias, use_bf16_matmul=True))
    np.testing.assert_allclose(np.asarray(out3), np.asarray(ref),
                               atol=3e-2, rtol=3e-2)

    # 4) NHWC output option (skips the trailing transpose back to NCHW).
    out4 = jax.block_until_ready(downsample(x, weight, bias, out_nhwc=True))
    np.testing.assert_allclose(np.asarray(out4),
                               np.asarray(jnp.transpose(ref, (0, 2, 3, 1))),
                               atol=2e-3, rtol=2e-3)

    print("KERNEL_OK")
</pallas_src>

<mosaic_0001>
module attributes {stable_mosaic.version = 11 : i64} {
  func.func @_downsample_kernel(%arg0: i32, %arg1: i32, %arg2: memref<1x64x1152xf32, #tpu.memory_space<vmem>>, %arg3: memref<1152x128xf32, #tpu.memory_space<vmem>>, %arg4: memref<1x128xf32, #tpu.memory_space<vmem>>, %arg5: memref<1x64x128xf32, #tpu.memory_space<vmem>>) attributes {dimension_semantics = [#tpu.dimension_semantics<parallel>, #tpu.dimension_semantics<parallel>], iteration_bounds = array<i64: 2, 1>, scalar_prefetch = 0 : i64, scratch_operands = 0 : i64, tpu.core_type = #tpu.core_type<tc>, window_params = [{transform_indices = @transform_0, window_bounds = array<i64: 1, 64, 1152>}, {pipeline_mode = #tpu.pipeline_mode<synchronous>, transform_indices = @transform_1, window_bounds = array<i64: 1152, 128>}, {pipeline_mode = #tpu.pipeline_mode<synchronous>, transform_indices = @transform_2, window_bounds = array<i64: 1, 128>}, {transform_indices = @transform_3, window_bounds = array<i64: 1, 64, 128>}]} {
    %c0 = arith.constant 0 : index
    %c0_0 = arith.constant 0 : index
    %c0_1 = arith.constant 0 : index
    %0 = vector.load %arg2[%c0, %c0_0, %c0_1] : memref<1x64x1152xf32, #tpu.memory_space<vmem>>, vector<1x64x1152xf32>
    %1 = vector.shape_cast %0 : vector<1x64x1152xf32> to vector<64x1152xf32>
    %c0_2 = arith.constant 0 : index
    %c0_3 = arith.constant 0 : index
    %2 = vector.load %arg3[%c0_2, %c0_3] : memref<1152x128xf32, #tpu.memory_space<vmem>>, vector<1152x128xf32>
    %cst = arith.constant dense<0.000000e+00> : vector<64x128xf32>
    %3 = tpu.matmul %1, %2, %cst {dimension_numbers = #tpu.dot_dimension_numbers<[1], [0], [0], [1], [0, 0, 1, 1], [], []>} : vector<64x1152xf32>, vector<1152x128xf32>, vector<64x128xf32> -> vector<64x128xf32>
    %c0_4 = arith.constant 0 : index
    %c0_5 = arith.constant 0 : index
    %4 = vector.load %arg4[%c0_4, %c0_5] : memref<1x128xf32, #tpu.memory_space<vmem>>, vector<1x128xf32>
    %5 = vector.broadcast %4 : vector<1x128xf32> to vector<64x128xf32>
    %6 = arith.addf %3, %5 : vector<64x128xf32>
    %c0_6 = arith.constant 0 : index
    %c0_7 = arith.constant 0 : index
    %c0_8 = arith.constant 0 : index
    %7 = vector.load %arg5[%c0_6, %c0_7, %c0_8] : memref<1x64x128xf32, #tpu.memory_space<vmem>>, vector<1x64x128xf32>
    %8 = vector.shape_cast %7 : vector<1x64x128xf32> to vector<64x128xf32>
    %9 = vector.shape_cast %6 : vector<64x128xf32> to vector<1x64x128xf32>
    tpu.vector_store %arg5[%c0_6, %c0_7, %c0_8], %9 {strides = array<i32>} : memref<1x64x128xf32, #tpu.memory_space<vmem>>, vector<1x64x128xf32>,
    return
  }
  func.func @transform_0(%arg0: i32, %arg1: i32) -> (i32, i32, i32) {
    %c0_i32 = arith.constant 0 : i32
    %c0_i32_0 = arith.constant 0 : i32
    return %arg0, %arg1, %c0_i32 : i32, i32, i32
  }
  func.func @transform_1(%arg0: i32, %arg1: i32) -> (i32, i32) {
    %c0_i32 = arith.constant 0 : i32
    %c0_i32_0 = arith.constant 0 : i32
    %c0_i32_1 = arith.constant 0 : i32
    return %c0_i32, %c0_i32_0 : i32, i32
  }
  func.func @transform_2(%arg0: i32, %arg1: i32) -> (i32, i32) {
    %c0_i32 = arith.constant 0 : i32
    %c0_i32_0 = arith.constant 0 : i32
    %c0_i32_1 = arith.constant 0 : i32
    return %c0_i32, %c0_i32_0 : i32, i32
  }
  func.func @transform_3(%arg0: i32, %arg1: i32) -> (i32, i32, i32) {
    %c0_i32 = arith.constant 0 : i32
    %c0_i32_0 = arith.constant 0 : i32
    return %arg0, %arg1, %c0_i32 : i32, i32, i32
  }
}

</mosaic_0001>

<llo_original>
// kernel: tpu_custom_call.1
$region0: #{tpu_custom_call.1}
  #allocation0 [shape = 'u32[]', space=smem, size = 0x4, offset = 0x4, fixed_abs, tag = 'smem constant byte address 0x4 - core index']
  #allocation1 [shape = 'u32[72,128]{1,0:T(1,128)}', space=vmem, size = 0x9000, scoped, tag = 'internal scratch']
  %s0 = inlined_call_operand.hbm [shape: f32[2,64,1152], index: 0, kind: input, shape index: {}]
  %s1 = inlined_call_operand.hbm [shape: f32[1152,128], index: 1, kind: input, shape index: {}]
  %s2 = inlined_call_operand.vmem [shape: f32[1,128], index: 2, kind: input, shape index: {}]
  %s3 = inlined_call_operand.hbm [shape: f32[2,64,128], index: 3, kind: output, shape index: {}]
  %s4 = sld [smem:[#allocation0]]
  $region53: #{tpu_custom_call.1} parent=0
    _
  %s6 = ssub.s32 1, %s4
  %s7 = scalar_select 0, %s6, %s4
  $region1: #{tpu_custom_call.1} parent=0
    #allocation2 [shape = 'u8[589824]{0}', space=vmem, size = 0x90000, scoped, tag = 'input window, operand 0']
    #allocation3 [shape = 's32[2]{0}', space=sflag, size = 0x8, scoped, tag = 'scoped memory for tpu_custom_call.1']
    #allocation4 [shape = 's32[2]{0}', space=sflag, size = 0x8, scoped, tag = 'scoped memory for tpu_custom_call.1']
    #allocation5 [shape = 'u8[589824]{0}', space=vmem, size = 0x90000, scoped, tag = 'input window, operand 1, single buffered']
    #allocation6 [shape = 's32[1]{0}', space=sflag, size = 0x4, scoped, tag = 'scoped memory for tpu_custom_call.1']
    #allocation7 [shape = 'u8[65536]{0}', space=vmem, size = 0x10000, scoped, tag = 'output window, operand 0']
    %8 = vsyncpa [#allocation3], 0
    %s9 = scalar_lea.sflag [#allocation3], 1
    %10 = vsyncpa %s9, 0
    %11 = vsyncpa [#allocation6], 0
    %12 = vsyncpa [#allocation4], 0
    %s13 = scalar_lea.sflag [#allocation4], 1
    %14 = vsyncpa %s13, 0
    loop: start=0, step=1, limit=4
    $region2: #{tpu_custom_call.1} parent=1 // loop_pre_header
      _
    $region3: #{tpu_custom_call.1} parent=1 // loop_header
      %s16 = sphi 0, %s20
      %p17 = scmp.ge.s32.totalorder %s16, 4
      %s23 = sphi 0, %s35
      %s24 = sphi 0, %s31
      %s25 = sphi 0, %s23
      %s26 = sphi 0, %s24
      %s27 = sphi 0, %s25
      %s28 = sphi 0, %s26
      %s40 = sphi 0, %s42
      %s43 = sphi 0, %s40
      %s44 = sphi 0, %s43
      %s60 = sphi 0, %s44
      %s64 = sphi 0, %s64
      %s66 = sphi 0, %s64
      %s67 = sphi 0, %s66
      %s81 = sphi 0, %s67
      %s85 = sphi 0, %s85
      %s87 = sphi 0, %s85
      %s88 = sphi 0, %s87
      %s102 = sphi 0, %s88
      %s110 = sphi 0, %s112
      %s113 = sphi 0, %s110
      %s114 = sphi 0, %s113
      %s130 = sphi 0, %s114
    $region4: #{tpu_custom_call.1} parent=1 // loop_header_branch
      %19 = sbr.rel (%p17) target = $region8
    $region5: #{tpu_custom_call.1} parent=1 // loop_body
      %s21 = ssub.s32 %s16, 1
      %s22 = ssub.s32 %s16, 2
      %s29 = sadd.s32 1, %s24
      %p30 = scmp.ge.s32.totalorder %s29, 1
      %s31 = scalar_select %p30, 0, %s29
      %s32 = sadd.s32 1, %s23
      %s33 = scalar_select %p30, %s32, %s23
      %p34 = scmp.ge.s32.totalorder %s33, 2
      %s35 = scalar_select %p34, 0, %s33
      %s36 = ssub.s32 %s23, %s35
      %s37 = ssub.s32 %s24, %s31
      %s38 = sor.u32 %s36, %s37
      %p39 = scmp.eq.s32.totalorder %s38, 0
      %s41 = sadd.s32 %s40, 1
      %s42 = scalar_select %p39, %s40, %s41
      %p45 = pneg %p39
      %p46 = scmp.eq.s32.totalorder %s16, 1
      %p47 = por %p45, %p46
      %p48 = scmp.ne.s32.totalorder %s40, %s43
      %p49 = scmp.eq.s32.totalorder %s16, 0
      %p50 = por %p48, %p49
      %p51 = scmp.ne.s32.totalorder %s40, %s43
      %p52 = scmp.eq.s32.totalorder %s21, 1
      %p53 = por %p51, %p52
      %p54 = scmp.ne.s32.totalorder %s43, %s44
      %p55 = scmp.eq.s32.totalorder %s21, 0
      %p56 = por %p54, %p55
      %p57 = scmp.ne.s32.totalorder %s43, %s44
      %p58 = scmp.eq.s32.totalorder %s22, 1
      %p59 = por %p57, %p58
      %p61 = scmp.ne.s32.totalorder %s44, %s60
      %p62 = scmp.eq.s32.totalorder %s22, 0
      %p63 = por %p61, %p62
      %s65 = sadd.s32 %s64, 1
      %p68 = scmp.eq.s32.totalorder %s16, 1
      %p69 = scmp.ne.s32.totalorder %s64, %s66
      %p70 = scmp.eq.s32.totalorder %s16, 0
      %p71 = por %p69, %p70
      %p72 = scmp.ne.s32.totalorder %s64, %s66
      %p73 = scmp.eq.s32.totalorder %s21, 1
      %p74 = por %p72, %p73
      %p75 = scmp.ne.s32.totalorder %s66, %s67
      %p76 = scmp.eq.s32.totalorder %s21, 0
      %p77 = por %p75, %p76
      %p78 = scmp.ne.s32.totalorder %s66, %s67
      %p79 = scmp.eq.s32.totalorder %s22, 1
      %p80 = por %p78, %p79
      %p82 = scmp.ne.s32.totalorder %s67, %s81
      %p83 = scmp.eq.s32.totalorder %s22, 0
      %p84 = por %p82, %p83
      %s86 = sadd.s32 %s85, 1
      %p89 = scmp.eq.s32.totalorder %s16, 1
      %p90 = scmp.ne.s32.totalorder %s85, %s87
      %p91 = scmp.eq.s32.totalorder %s16, 0
      %p92 = por %p90, %p91
      %p93 = scmp.ne.s32.totalorder %s85, %s87
      %p94 = scmp.eq.s32.totalorder %s21, 1
      %p95 = por %p93, %p94
      %p96 = scmp.ne.s32.totalorder %s87, %s88
      %p97 = scmp.eq.s32.totalorder %s21, 0
      %p98 = por %p96, %p97
      %p99 = scmp.ne.s32.totalorder %s87, %s88
      %p100 = scmp.eq.s32.totalorder %s22, 1
      %p101 = por %p99, %p100
      %p103 = scmp.ne.s32.totalorder %s88, %s102
      %p104 = scmp.eq.s32.totalorder %s22, 0
      %p105 = por %p103, %p104
      %s106 = ssub.s32 %s23, %s35
      %s107 = ssub.s32 %s24, %s31
      %s108 = sor.u32 %s106, %s107
      %p109 = scmp.eq.s32.totalorder %s108, 0
      %s111 = sadd.s32 %s110, 1
      %s112 = scalar_select %p109, %s110, %s111
      %p115 = pneg %p109
      %p116 = scmp.eq.s32.totalorder %s16, 1
      %p117 = por %p115, %p116
      %p118 = scmp.ne.s32.totalorder %s110, %s113
      %p119 = scmp.eq.s32.totalorder %s16, 0
      %p120 = por %p118, %p119
      %p121 = scmp.ne.s32.totalorder %s110, %s113
      %p122 = scmp.eq.s32.totalorder %s21, 1
      %p123 = por %p121, %p122
      %p124 = scmp.ne.s32.totalorder %s113, %s114
      %p125 = scmp.eq.s32.totalorder %s21, 0
      %p126 = por %p124, %p125
      %p127 = scmp.ne.s32.totalorder %s113, %s114
      %p128 = scmp.eq.s32.totalorder %s22, 1
      %p129 = por %p127, %p128
      %p131 = scmp.ne.s32.totalorder %s114, %s130
      %p132 = scmp.eq.s32.totalorder %s22, 0
      %p133 = por %p131, %p132
      %p134 = scmp.le.s32.totalorder 1, %s16
      %p135 = scmp.lt.s32.totalorder %s16, 3
      %p136 = pnand %p134, %p135
      %p137 = pneg %p136
      // Predicated region
      $region9: #{tpu_custom_call.1} parent=5 // pred_check
        _
      $region10: #{tpu_custom_call.1} parent=5 // pred_check_branch
        %139 = sbr.rel (%p136) target = $region12
      $region11: #{tpu_custom_call.1} parent=5 // pred_region
        %s140 = ssub.s32 %s16, 1
        // Predicated region
        $region13: #{tpu_custom_call.1} parent=11 // pred_check
          %p141 = pneg %p77
        $region14: #{tpu_custom_call.1} parent=11 // pred_check_branch
          %143 = sbr.rel (%p141) target = $region16
        $region15: #{tpu_custom_call.1} parent=11 // pred_region
          %145 = vsyncadd [#allocation6], 0
          %s146 = sshll.u32 %s1, 4
          %s147 = int_to_ptr.hbm [resolvable:$true] %s146
          %s148 = sshll.u32 [#allocation5], 4
          %s149 = int_to_ptr.vmem [resolvable:$true] %s148
          %154 = dma.hbm_to_vmem [thread:$0]  %s147, 18432, %s149, [#allocation6], 128, 128, 8
        $region16: #{tpu_custom_call.1} parent=11 // pred_fallthru
          _
        // Predicated region
        $region17: #{tpu_custom_call.1} parent=11 // pred_check
          %p155 = pneg %p98
        $region18: #{tpu_custom_call.1} parent=11 // pred_check_branch
          %157 = sbr.rel (%p155) target = $region20
        $region19: #{tpu_custom_call.1} parent=11 // pred_region
          _
        $region20: #{tpu_custom_call.1} parent=11 // pred_fallthru
          _
      $region12: #{tpu_custom_call.1} parent=5 // pred_fallthru
        _
      %p158 = scmp.lt.s32.totalorder %s16, 2
      // Predicated region
      $region21: #{tpu_custom_call.1} parent=5 // pred_check
        %p159 = pneg %p158
      $region22: #{tpu_custom_call.1} parent=5 // pred_check_branch
        %161 = sbr.rel (%p159) target = $region24
      $region23: #{tpu_custom_call.1} parent=5 // pred_region
        // Predicated region
        $region25: #{tpu_custom_call.1} parent=23 // pred_check
          %p162 = pneg %p50
        $region26: #{tpu_custom_call.1} parent=23 // pred_check_branch
          %164 = sbr.rel (%p162) target = $region28
        $region27: #{tpu_custom_call.1} parent=23 // pred_region
          %s165 = sand.u32 %s40, 1
          %s166 = scalar_lea.sflag [#allocation3], %s165
          %s167 = sand.u32 %s40, 1
          %s168 = smul.addr %s167, 576
          %s169 = scalar_lea.vmem [#allocation2], %s168
          %s170 = smul.u32 8, %s24
          %172 = vsyncadd %s166, 0
          %s173 = smul.addr %s170, 9
          %s174 = smul.addr %s23, 72
          %s175 = sadd.s32 %s173, %s174
          %s176 = smul.addr %s175, 8
          %s177 = scalar_lea.hbm %s0, %s176
          %s178 = sshll.u32 %s177, 4
          %s179 = int_to_ptr.hbm [resolvable:$true] %s178
          %s180 = sshll.u32 %s169, 4
          %s181 = int_to_ptr.vmem [resolvable:$true] %s180
          %186 = dma.hbm_to_vmem [thread:$0]  %s179, 9216, %s181, %s166, 1152, 1152, 72
        $region28: #{tpu_custom_call.1} parent=23 // pred_fallthru
          _
      $region24: #{tpu_custom_call.1} parent=5 // pred_fallthru
        _
      %p187 = scmp.le.s32.totalorder 1, %s16
      %p188 = scmp.lt.s32.totalorder %s16, 3
      %p189 = pnand %p187, %p188
      %p190 = pneg %p189
      // Predicated region
      $region29: #{tpu_custom_call.1} parent=5 // pred_check
        _
      $region30: #{tpu_custom_call.1} parent=5 // pred_check_branch
        %192 = sbr.rel (%p189) target = $region32
      $region31: #{tpu_custom_call.1} parent=5 // pred_region
        %s193 = ssub.s32 %s16, 1
        %s194 = sand.u32 %s43, 1
        %s195 = scalar_lea.sflag [#allocation3], %s194
        %s196 = sand.u32 %s43, 1
        %s197 = smul.addr %s196, 576
        %s198 = scalar_lea.vmem [#allocation2], %s197
        // Predicated region
        $region33: #{tpu_custom_call.1} parent=31 // pred_check
          %p199 = pneg %p56
        $region34: #{tpu_custom_call.1} parent=31 // pred_check_branch
          %201 = sbr.rel (%p199) target = $region36
        $region35: #{tpu_custom_call.1} parent=31 // pred_region
          %203 = dma.done %s195, 9216
        $region36: #{tpu_custom_call.1} parent=31 // pred_fallthru
          _
        // Predicated region
        $region37: #{tpu_custom_call.1} parent=31 // pred_check
          %p204 = pneg %p77
        $region38: #{tpu_custom_call.1} parent=31 // pred_check_branch
          %206 = sbr.rel (%p204) target = $region40
        $region39: #{tpu_custom_call.1} parent=31 // pred_region
          %208 = dma.done [#allocation6], 18432
        $region40: #{tpu_custom_call.1} parent=31 // pred_fallthru
          _
        %s209 = sand.u32 %s43, 1
        %s210 = scalar_lea.sflag [#allocation3], %s209
        %s211 = sand.u32 %s43, 1
        %s212 = smul.addr %s211, 576
        %s213 = scalar_lea.vmem [#allocation2], %s212
        %p214 = pneg %p56
        %p215 = pneg %p53
        %p216 = pneg %p77
        %p217 = pneg %p74
        %p218 = pneg %p98
        %p219 = pneg %p95
        %p220 = pneg %p126
        %p221 = pneg %p123
        %s222 = sand.u32 %s113, 1
        %s223 = scalar_lea.sflag [#allocation4], %s222
        %s224 = sand.u32 %s113, 1
        %s225 = smul.addr %s224, 64
        %s226 = scalar_lea.vmem [#allocation7], %s225
        %s227 = smul.u32 8, %s26
        %s228 = smul.u32 8, %s26
        %v229 = vld [vmem:[%s198] sm:$0xff]
        %v230 = vld [vmem:[%s198 + $0x8] sm:$0xff]
        %v231 = vld [vmem:[%s198 + $0x10] sm:$0xff]
        %v232 = vld [vmem:[%s198 + $0x18] sm:$0xff]
        %v233 = vld [vmem:[%s198 + $0x20] sm:$0xff]
        %v234 = vld [vmem:[%s198 + $0x28] sm:$0xff]
        %v235 = vld [vmem:[%s198 + $0x30] sm:$0xff]
        %v236 = vld [vmem:[%s198 + $0x38] sm:$0xff]
        %v237 = vld [vmem:[%s198 + $0x40] sm:$0xff]
        %v238 = vld [vmem:[%s198 + $0x48] sm:$0xff]
        %v239 = vld [vmem:[%s198 + $0x50] sm:$0xff]
        %v240 = vld [vmem:[%s198 + $0x58] sm:$0xff]
        %v241 = vld [vmem:[%s198 + $0x60] sm:$0xff]
        %v242 = vld [vmem:[%s198 + $0x68] sm:$0xff]
        %v243 = vld [vmem:[%s198 + $0x70] sm:$0xff]
        %v244 = vld [vmem:[%s198 + $0x78] sm:$0xff]
        %v245 = vld [vmem:[%s198 + $0x80] sm:$0xff]
        %v246 = vld [vmem:[%s198 + $0x88] sm:$0xff]
        %v247 = vld [vmem:[%s198 + $0x90] sm:$0xff]
        %v248 = vld [vmem:[%s198 + $0x98] sm:$0xff]
        %v249 = vld [vmem:[%s198 + $0xa0] sm:$0xff]
        %v250 = vld [vmem:[%s198 + $0xa8] sm:$0xff]
        %v251 = vld [vmem:[%s198 + $0xb0] sm:$0xff]
        %v252 = vld [vmem:[%s198 + $0xb8] sm:$0xff]
        %v253 = vld [vmem:[%s198 + $0xc0] sm:$0xff]
        %v254 = vld [vmem:[%s198 + $0xc8] sm:$0xff]
        %v255 = vld [vmem:[%s198 + $0xd0] sm:$0xff]
        %v256 = vld [vmem:[%s198 + $0xd8] sm:$0xff]
        %v257 = vld [vmem:[%s198 + $0xe0] sm:$0xff]
        %v258 = vld [vmem:[%s198 + $0xe8] sm:$0xff]
        %v259 = vld [vmem:[%s198 + $0xf0] sm:$0xff]
        %v260 = vld [vmem:[%s198 + $0xf8] sm:$0xff]
        %v261 = vld [vmem:[%s198 + $0x100] sm:$0xff]
        %v262 = vld [vmem:[%s198 + $0x108] sm:$0xff]
        %v263 = vld [vmem:[%s198 + $0x110] sm:$0xff]
        %v264 = vld [vmem:[%s198 + $0x118] sm:$0xff]
        %v265 = vld [vmem:[%s198 + $0x120] sm:$0xff]
        %v266 = vld [vmem:[%s198 + $0x128] sm:$0xff]
        %v267 = vld [vmem:[%s198 + $0x130] sm:$0xff]
        %v268 = vld [vmem:[%s198 + $0x138] sm:$0xff]
        %v269 = vld [vmem:[%s198 + $0x140] sm:$0xff]
        %v270 = vld [vmem:[%s198 + $0x148] sm:$0xff]
        %v271 = vld [vmem:[%s198 + $0x150] sm:$0xff]
        %v272 = vld [vmem:[%s198 + $0x158] sm:$0xff]
        %v273 = vld [vmem:[%s198 + $0x160] sm:$0xff]
        %v274 = vld [vmem:[%s198 + $0x168] sm:$0xff]
        %v275 = vld [vmem:[%s198 + $0x170] sm:$0xff]
        %v276 = vld [vmem:[%s198 + $0x178] sm:$0xff]
        %v277 = vld [vmem:[%s198 + $0x180] sm:$0xff]
        %v278 = vld [vmem:[%s198 + $0x188] sm:$0xff]
        %v279 = vld [vmem:[%s198 + $0x190] sm:$0xff]
        %v280 = vld [vmem:[%s198 + $0x198] sm:$0xff]
        %v281 = vld [vmem:[%s198 + $0x1a0] sm:$0xff]
        %v282 = vld [vmem:[%s198 + $0x1a8] sm:$0xff]
        %v283 = vld [vmem:[%s198 + $0x1b0] sm:$0xff]
        %v284 = vld [vmem:[%s198 + $0x1b8] sm:$0xff]
        %v285 = vld [vmem:[%s198 + $0x1c0] sm:$0xff]
        %v286 = vld [vmem:[%s198 + $0x1c8] sm:$0xff]
        %v287 = vld [vmem:[%s198 + $0x1d0] sm:$0xff]
        %v288 = vld [vmem:[%s198 + $0x1d8] sm:$0xff]
        %v289 = vld [vmem:[%s198 + $0x1e0] sm:$0xff]
        %v290 = vld [vmem:[%s198 + $0x1e8] sm:$0xff]
        %v291 = vld [vmem:[%s198 + $0x1f0] sm:$0xff]
        %v292 = vld [vmem:[%s198 + $0x1f8] sm:$0xff]
        %v293 = vld [vmem:[%s198 + $0x200] sm:$0xff]
        %v294 = vld [vmem:[%s198 + $0x208] sm:$0xff]
        %v295 = vld [vmem:[%s198 + $0x210] sm:$0xff]
        %v296 = vld [vmem:[%s198 + $0x218] sm:$0xff]
        %v297 = vld [vmem:[%s198 + $0x220] sm:$0xff]
        %v298 = vld [vmem:[%s198 + $0x228] sm:$0xff]
        %v299 = vld [vmem:[%s198 + $0x230] sm:$0xff]
        %v300 = vld [vmem:[%s198 + $0x238] sm:$0xff]
        %v301 = vld [vmem:[#allocation5] sm:$0xff]
        %v302 = vld [vmem:[#allocation5 + $0x8] sm:$0xff]
        %v303 = vld [vmem:[#allocation5 + $0x10] sm:$0xff]
        %v304 = vld [vmem:[#allocation5 + $0x18] sm:$0xff]
        %v305 = vld [vmem:[#allocation5 + $0x20] sm:$0xff]
        %v306 = vld [vmem:[#allocation5 + $0x28] sm:$0xff]
        %v307 = vld [vmem:[#allocation5 + $0x30] sm:$0xff]
        %v308 = vld [vmem:[#allocation5 + $0x38] sm:$0xff]
        %v309 = vld [vmem:[#allocation5 + $0x40] sm:$0xff]
        %v310 = vld [vmem:[#allocation5 + $0x48] sm:$0xff]
        %v311 = vld [vmem:[#allocation5 + $0x50] sm:$0xff]
        %v312 = vld [vmem:[#allocation5 + $0x58] sm:$0xff]
        %v313 = vld [vmem:[#allocation5 + $0x60] sm:$0xff]
        %v314 = vld [vmem:[#allocation5 + $0x68] sm:$0xff]
        %v315 = vld [vmem:[#allocation5 + $0x70] sm:$0xff]
        %v316 = vld [vmem:[#allocation5 + $0x78] sm:$0xff]
        %v317 = vld [vmem:[#allocation5 + $0x80] sm:$0xff]
        %v318 = vld [vmem:[#allocation5 + $0x88] sm:$0xff]
        %v319 = vld [vmem:[#allocation5 + $0x90] sm:$0xff]
        %v320 = vld [vmem:[#allocation5 + $0x98] sm:$0xff]
        %v321 = vld [vmem:[#allocation5 + $0xa0] sm:$0xff]
        %v322 = vld [vmem:[#allocation5 + $0xa8] sm:$0xff]
        %v323 = vld [vmem:[#allocation5 + $0xb0] sm:$0xff]
        %v324 = vld [vmem:[#allocation5 + $0xb8] sm:$0xff]
        %v325 = vld [vmem:[#allocation5 + $0xc0] sm:$0xff]
        %v326 = vld [vmem:[#allocation5 + $0xc8] sm:$0xff]
        %v327 = vld [vmem:[#allocation5 + $0xd0] sm:$0xff]
        %v328 = vld [vmem:[#allocation5 + $0xd8] sm:$0xff]
        %v329 = vld [vmem:[#allocation5 + $0xe0] sm:$0xff]
        %v330 = vld [vmem:[#allocation5 + $0xe8] sm:$0xff]
        %v331 = vld [vmem:[#allocation5 + $0xf0] sm:$0xff]
        %v332 = vld [vmem:[#allocation5 + $0xf8] sm:$0xff]
        %v333 = vld [vmem:[#allocation5 + $0x100] sm:$0xff]
        %v334 = vld [vmem:[#allocation5 + $0x108] sm:$0xff]
        %v335 = vld [vmem:[#allocation5 + $0x110] sm:$0xff]
        %v336 = vld [vmem:[#allocation5 + $0x118] sm:$0xff]
        %v337 = vld [vmem:[#allocation5 + $0x120] sm:$0xff]
        %v338 = vld [vmem:[#allocation5 + $0x128] sm:$0xff]
        %v339 = vld [vmem:[#allocation5 + $0x130] sm:$0xff]
        %v340 = vld [vmem:[#allocation5 + $0x138] sm:$0xff]
        %v341 = vld [vmem:[#allocation5 + $0x140] sm:$0xff]
        %v342 = vld [vmem:[#allocation5 + $0x148] sm:$0xff]
        %v343 = vld [vmem:[#allocation5 + $0x150] sm:$0xff]
        %v344 = vld [vmem:[#allocation5 + $0x158] sm:$0xff]
        %v345 = vld [vmem:[#allocation5 + $0x160] sm:$0xff]
        %v346 = vld [vmem:[#allocation5 + $0x168] sm:$0xff]
        %v347 = vld [vmem:[#allocation5 + $0x170] sm:$0xff]
        %v348 = vld [vmem:[#allocation5 + $0x178] sm:$0xff]
        %v349 = vld [vmem:[#allocation5 + $0x180] sm:$0xff]
        %v350 = vld [vmem:[#allocation5 + $0x188] sm:$0xff]
        %v351 = vld [vmem:[#allocation5 + $0x190] sm:$0xff]
        %v352 = vld [vmem:[#allocation5 + $0x198] sm:$0xff]
        %v353 = vld [vmem:[#allocation5 + $0x1a0] sm:$0xff]
        %v354 = vld [vmem:[#allocation5 + $0x1a8] sm:$0xff]
        %v355 = vld [vmem:[#allocation5 + $0x1b0] sm:$0xff]
        %v356 = vld [vmem:[#allocation5 + $0x1b8] sm:$0xff]
        %v357 = vld [vmem:[#allocation5 + $0x1c0] sm:$0xff]
        %v358 = vld [vmem:[#allocation5 + $0x1c8] sm:$0xff]
        %v359 = vld [vmem:[#allocation5 + $0x1d0] sm:$0xff]
        %v360 = vld [vmem:[#allocation5 + $0x1d8] sm:$0xff]
        %v361 = vld [vmem:[#allocation5 + $0x1e0] sm:$0xff]
        %v362 = vld [vmem:[#allocation5 + $0x1e8] sm:$0xff]
        %v363 = vld [vmem:[#allocation5 + $0x1f0] sm:$0xff]
        %v364 = vld [vmem:[#allocation5 + $0x1f8] sm:$0xff]
        %v365 = vld [vmem:[#allocation5 + $0x200] sm:$0xff]
        %v366 = vld [vmem:[#allocation5 + $0x208] sm:$0xff]
        %v367 = vld [vmem:[#allocation5 + $0x210] sm:$0xff]
        %v368 = vld [vmem:[#allocation5 + $0x218] sm:$0xff]
        %v369 = vld [vmem:[#allocation5 + $0x220] sm:$0xff]
        %v370 = vld [vmem:[#allocation5 + $0x228] sm:$0xff]
        %v371 = vld [vmem:[#allocation5 + $0x230] sm:$0xff]
        %v372 = vld [vmem:[#allocation5 + $0x238] sm:$0xff]
        %v373 = vld [vmem:[#allocation5 + $0x240] sm:$0xff]
        %v374 = vld [vmem:[#allocation5 + $0x248] sm:$0xff]
        %v375 = vld [vmem:[#allocation5 + $0x250] sm:$0xff]
        %v376 = vld [vmem:[#allocation5 + $0x258] sm:$0xff]
        %v377 = vld [vmem:[#allocation5 + $0x260] sm:$0xff]
        %v378 = vld [vmem:[#allocation5 + $0x268] sm:$0xff]
        %v379 = vld [vmem:[#allocation5 + $0x270] sm:$0xff]
        %v380 = vld [vmem:[#allocation5 + $0x278] sm:$0xff]
        %v381 = vld [vmem:[#allocation5 + $0x280] sm:$0xff]
        %v382 = vld [vmem:[#allocation5 + $0x288] sm:$0xff]
        %v383 = vld [vmem:[#allocation5 + $0x290] sm:$0xff]
        %v384 = vld [vmem:[#allocation5 + $0x298] sm:$0xff]
        %v385 = vld [vmem:[#allocation5 + $0x2a0] sm:$0xff]
        %v386 = vld [vmem:[#allocation5 + $0x2a8] sm:$0xff]
        %v387 = vld [vmem:[#allocation5 + $0x2b0] sm:$0xff]
        %v388 = vld [vmem:[#allocation5 + $0x2b8] sm:$0xff]
        %v389 = vld [vmem:[#allocation5 + $0x2c0] sm:$0xff]
        %v390 = vld [vmem:[#allocation5 + $0x2c8] sm:$0xff]
        %v391 = vld [vmem:[#allocation5 + $0x2d0] sm:$0xff]
        %v392 = vld [vmem:[#allocation5 + $0x2d8] sm:$0xff]
        %v393 = vld [vmem:[#allocation5 + $0x2e0] sm:$0xff]
        %v394 = vld [vmem:[#allocation5 + $0x2e8] sm:$0xff]
        %v395 = vld [vmem:[#allocation5 + $0x2f0] sm:$0xff]
        %v396 = vld [vmem:[#allocation5 + $0x2f8] sm:$0xff]
        %v397 = vld [vmem:[#allocation5 + $0x300] sm:$0xff]
        %v398 = vld [vmem:[#allocation5 + $0x308] sm:$0xff]
        %v399 = vld [vmem:[#allocation5 + $0x310] sm:$0xff]
        %v400 = vld [vmem:[#allocation5 + $0x318] sm:$0xff]
        %v401 = vld [vmem:[#allocation5 + $0x320] sm:$0xff]
        %v402 = vld [vmem:[#allocation5 + $0x328] sm:$0xff]
        %v403 = vld [vmem:[#allocation5 + $0x330] sm:$0xff]
        %v404 = vld [vmem:[#allocation5 + $0x338] sm:$0xff]
        %v405 = vld [vmem:[#allocation5 + $0x340] sm:$0xff]
        %v406 = vld [vmem:[#allocation5 + $0x348] sm:$0xff]
        %v407 = vld [vmem:[#allocation5 + $0x350] sm:$0xff]
        %v408 = vld [vmem:[#allocation5 + $0x358] sm:$0xff]
        %v409 = vld [vmem:[#allocation5 + $0x360] sm:$0xff]
        %v410 = vld [vmem:[#allocation5 + $0x368] sm:$0xff]
        %v411 = vld [vmem:[#allocation5 + $0x370] sm:$0xff]
        %v412 = vld [vmem:[#allocation5 + $0x378] sm:$0xff]
        %v413 = vld [vmem:[#allocation5 + $0x380] sm:$0xff]
        %v414 = vld [vmem:[#allocation5 + $0x388] sm:$0xff]
        %v415 = vld [vmem:[#allocation5 + $0x390] sm:$0xff]
        %v416 = vld [vmem:[#allocation5 + $0x398] sm:$0xff]
        %v417 = vld [vmem:[#allocation5 + $0x3a0] sm:$0xff]
        %v418 = vld [vmem:[#allocation5 + $0x3a8] sm:$0xff]
        %v419 = vld [vmem:[#allocation5 + $0x3b0] sm:$0xff]
        %v420 = vld [vmem:[#allocation5 + $0x3b8] sm:$0xff]
        %v421 = vld [vmem:[#allocation5 + $0x3c0] sm:$0xff]
        %v422 = vld [vmem:[#allocation5 + $0x3c8] sm:$0xff]
        %v423 = vld [vmem:[#allocation5 + $0x3d0] sm:$0xff]
        %v424 = vld [vmem:[#allocation5 + $0x3d8] sm:$0xff]
        %v425 = vld [vmem:[#allocation5 + $0x3e0] sm:$0xff]
        %v426 = vld [vmem:[#allocation5 + $0x3e8] sm:$0xff]
        %v427 = vld [vmem:[#allocation5 + $0x3f0] sm:$0xff]
        %v428 = vld [vmem:[#allocation5 + $0x3f8] sm:$0xff]
        %v429 = vld [vmem:[#allocation5 + $0x400] sm:$0xff]
        %v430 = vld [vmem:[#allocation5 + $0x408] sm:$0xff]
        %v431 = vld [vmem:[#allocation5 + $0x410] sm:$0xff]
        %v432 = vld [vmem:[#allocation5 + $0x418] sm:$0xff]
        %v433 = vld [vmem:[#allocation5 + $0x420] sm:$0xff]
        %v434 = vld [vmem:[#allocation5 + $0x428] sm:$0xff]
        %v435 = vld [vmem:[#allocation5 + $0x430] sm:$0xff]
        %v436 = vld [vmem:[#allocation5 + $0x438] sm:$0xff]
        %v437 = vld [vmem:[#allocation5 + $0x440] sm:$0xff]
        %v438 = vld [vmem:[#allocation5 + $0x448] sm:$0xff]
        %v439 = vld [vmem:[#allocation5 + $0x450] sm:$0xff]
        %v440 = vld [vmem:[#allocation5 + $0x458] sm:$0xff]
        %v441 = vld [vmem:[#allocation5 + $0x460] sm:$0xff]
        %v442 = vld [vmem:[#allocation5 + $0x468] sm:$0xff]
        %v443 = vld [vmem:[#allocation5 + $0x470] sm:$0xff]
        %v444 = vld [vmem:[#allocation5 + $0x478] sm:$0xff]
        %v445 = vld [vmem:[%s2] sm:$0x1]
        %v447 = vperm.slane %v445, 0
        %449 = vmatpush.msra.mxu0 %v316
        %450 = vmatpush.msra.mxu0 %v315
        %451 = vmatpush.msra.mxu0 %v314
        %452 = vmatpush.msra.mxu0 %v313
        %453 = vmatpush.msra.mxu0 %v312
        %454 = vmatpush.msra.mxu0 %v311
        %455 = vmatpush.msra.mxu0 %v310
        %456 = vmatpush.msra.mxu0 %v309
        %457 = vmatpush.msra.mxu0 %v308
        %458 = vmatpush.msra.mxu0 %v307
        %459 = vmatpush.msra.mxu0 %v306
        %460 = vmatpush.msra.mxu0 %v305
        %461 = vmatpush.msra.mxu0 %v304
        %462 = vmatpush.msra.mxu0 %v303
        %463 = vmatpush.msra.mxu0 %v302
        %464 = vmatpush.msra.mxu0 %v301
        %465 = vmatmul.f32.gmra.mxu0 %v229
        %v466 = vpop.f32.mrf.mxu0
        %v467 = vadd.f32 %v447, %v466
        %468 = vmatmul.f32.gmra.mxu0 %v238
        %v469 = vpop.f32.mrf.mxu0
        %v470 = vadd.f32 %v447, %v469
        %471 = vmatmul.f32.gmra.mxu0 %v247
        %v472 = vpop.f32.mrf.mxu0
        %v473 = vadd.f32 %v447, %v472
        %474 = vmatmul.f32.gmra.mxu0 %v256
        %v475 = vpop.f32.mrf.mxu0
        %v476 = vadd.f32 %v447, %v475
        %477 = vmatmul.f32.gmra.mxu0 %v265
        %v478 = vpop.f32.mrf.mxu0
        %v479 = vadd.f32 %v447, %v478
        %480 = vmatmul.f32.gmra.mxu0 %v274
        %v481 = vpop.f32.mrf.mxu0
        %v482 = vadd.f32 %v447, %v481
        %483 = vmatmul.f32.gmra.mxu0 %v283
        %v484 = vpop.f32.mrf.mxu0
        %v485 = vadd.f32 %v447, %v484
        %486 = vmatmul.f32.gmra.mxu0 %v292
        %v487 = vpop.f32.mrf.mxu0
        %v488 = vadd.f32 %v447, %v487
        %489 = vdwg.mxu0
        %490 = vmatpush.msra.mxu0 %v332
        %491 = vmatpush.msra.mxu0 %v331
        %492 = vmatpush.msra.mxu0 %v330
        %493 = vmatpush.msra.mxu0 %v329
        %494 = vmatpush.msra.mxu0 %v328
        %495 = vmatpush.msra.mxu0 %v327
        %496 = vmatpush.msra.mxu0 %v326
        %497 = vmatpush.msra.mxu0 %v325
        %498 = vmatpush.msra.mxu0 %v324
        %499 = vmatpush.msra.mxu0 %v323
        %500 = vmatpush.msra.mxu0 %v322
        %501 = vmatpush.msra.mxu0 %v321
        %502 = vmatpush.msra.mxu0 %v320
        %503 = vmatpush.msra.mxu0 %v319
        %504 = vmatpush.msra.mxu0 %v318
        %505 = vmatpush.msra.mxu0 %v317
        %506 = vmatmul.f32.gmra.mxu0 %v230
        %v507 = vpop.f32.mrf.mxu0
        %v508 = vadd.f32 %v467, %v507
        %509 = vmatmul.f32.gmra.mxu0 %v239
        %v510 = vpop.f32.mrf.mxu0
        %v511 = vadd.f32 %v470, %v510
        %512 = vmatmul.f32.gmra.mxu0 %v248
        %v513 = vpop.f32.mrf.mxu0
        %v514 = vadd.f32 %v473, %v513
        %515 = vmatmul.f32.gmra.mxu0 %v257
        %v516 = vpop.f32.mrf.mxu0
        %v517 = vadd.f32 %v476, %v516
        %518 = vmatmul.f32.gmra.mxu0 %v266
        %v519 = vpop.f32.mrf.mxu0
        %v520 = vadd.f32 %v479, %v519
        %521 = vmatmul.f32.gmra.mxu0 %v275
        %v522 = vpop.f32.mrf.mxu0
        %v523 = vadd.f32 %v482, %v522
        %524 = vmatmul.f32.gmra.mxu0 %v284
        %v525 = vpop.f32.mrf.mxu0
        %v526 = vadd.f32 %v485, %v525
        %527 = vmatmul.f32.gmra.mxu0 %v293
        %v528 = vpop.f32.mrf.mxu0
        %v529 = vadd.f32 %v488, %v528
        %530 = vdwg.mxu0
        %531 = vmatpush.msra.mxu0 %v348
        %532 = vmatpush.msra.mxu0 %v347
        %533 = vmatpush.msra.mxu0 %v346
        %534 = vmatpush.msra.mxu0 %v345
        %535 = vmatpush.msra.mxu0 %v344
        %536 = vmatpush.msra.mxu0 %v343
        %537 = vmatpush.msra.mxu0 %v342
        %538 = vmatpush.msra.mxu0 %v341
        %539 = vmatpush.msra.mxu0 %v340
        %540 = vmatpush.msra.mxu0 %v339
        %541 = vmatpush.msra.mxu0 %v338
        %542 = vmatpush.msra.mxu0 %v337
        %543 = vmatpush.msra.mxu0 %v336
        %544 = vmatpush.msra.mxu0 %v335
        %545 = vmatpush.msra.mxu0 %v334
        %546 = vmatpush.msra.mxu0 %v333
        %547 = vmatmul.f32.gmra.mxu0 %v231
        %v548 = vpop.f32.mrf.mxu0
        %v549 = vadd.f32 %v508, %v548
        %550 = vmatmul.f32.gmra.mxu0 %v240
        %v551 = vpop.f32.mrf.mxu0
        %v552 = vadd.f32 %v511, %v551
        %553 = vmatmul.f32.gmra.mxu0 %v249
        %v554 = vpop.f32.mrf.mxu0
        %v555 = vadd.f32 %v514, %v554
        %556 = vmatmul.f32.gmra.mxu0 %v258
        %v557 = vpop.f32.mrf.mxu0
        %v558 = vadd.f32 %v517, %v557
        %559 = vmatmul.f32.gmra.mxu0 %v267
        %v560 = vpop.f32.mrf.mxu0
        %v561 = vadd.f32 %v520, %v560
        %562 = vmatmul.f32.gmra.mxu0 %v276
        %v563 = vpop.f32.mrf.mxu0
        %v564 = vadd.f32 %v523, %v563
        %565 = vmatmul.f32.gmra.mxu0 %v285
        %v566 = vpop.f32.mrf.mxu0
        %v567 = vadd.f32 %v526, %v566
        %568 = vmatmul.f32.gmra.mxu0 %v294
        %v569 = vpop.f32.mrf.mxu0
        %v570 = vadd.f32 %v529, %v569
        %571 = vdwg.mxu0
        %572 = vmatpush.msra.mxu0 %v364
        %573 = vmatpush.msra.mxu0 %v363
        %574 = vmatpush.msra.mxu0 %v362
        %575 = vmatpush.msra.mxu0 %v361
        %576 = vmatpush.msra.mxu0 %v360
        %577 = vmatpush.msra.mxu0 %v359
        %578 = vmatpush.msra.mxu0 %v358
        %579 = vmatpush.msra.mxu0 %v357
        %580 = vmatpush.msra.mxu0 %v356
        %581 = vmatpush.msra.mxu0 %v355
        %582 = vmatpush.msra.mxu0 %v354
        %583 = vmatpush.msra.mxu0 %v353
        %584 = vmatpush.msra.mxu0 %v352
        %585 = vmatpush.msra.mxu0 %v351
        %586 = vmatpush.msra.mxu0 %v350
        %587 = vmatpush.msra.mxu0 %v349
        %588 = vmatmul.f32.gmra.mxu0 %v232
        %v589 = vpop.f32.mrf.mxu0
        %v590 = vadd.f32 %v549, %v589
        %591 = vmatmul.f32.gmra.mxu0 %v241
        %v592 = vpop.f32.mrf.mxu0
        %v593 = vadd.f32 %v552, %v592
        %594 = vmatmul.f32.gmra.mxu0 %v250
        %v595 = vpop.f32.mrf.mxu0
        %v596 = vadd.f32 %v555, %v595
        %597 = vmatmul.f32.gmra.mxu0 %v259
        %v598 = vpop.f32.mrf.mxu0
        %v599 = vadd.f32 %v558, %v598
        %600 = vmatmul.f32.gmra.mxu0 %v268
        %v601 = vpop.f32.mrf.mxu0
        %v602 = vadd.f32 %v561, %v601
        %603 = vmatmul.f32.gmra.mxu0 %v277
        %v604 = vpop.f32.mrf.mxu0
        %v605 = vadd.f32 %v564, %v604
        %606 = vmatmul.f32.gmra.mxu0 %v286
        %v607 = vpop.f32.mrf.mxu0
        %v608 = vadd.f32 %v567, %v607
        %609 = vmatmul.f32.gmra.mxu0 %v295
        %v610 = vpop.f32.mrf.mxu0
        %v611 = vadd.f32 %v570, %v610
        %612 = vdwg.mxu0
        %613 = vmatpush.msra.mxu0 %v380
        %614 = vmatpush.msra.mxu0 %v379
        %615 = vmatpush.msra.mxu0 %v378
        %616 = vmatpush.msra.mxu0 %v377
        %617 = vmatpush.msra.mxu0 %v376
        %618 = vmatpush.msra.mxu0 %v375
        %619 = vmatpush.msra.mxu0 %v374
        %620 = vmatpush.msra.mxu0 %v373
        %621 = vmatpush.msra.mxu0 %v372
        %622 = vmatpush.msra.mxu0 %v371
        %623 = vmatpush.msra.mxu0 %v370
        %624 = vmatpush.msra.mxu0 %v369
        %625 = vmatpush.msra.mxu0 %v368
        %626 = vmatpush.msra.mxu0 %v367
        %627 = vmatpush.msra.mxu0 %v366
        %628 = vmatpush.msra.mxu0 %v365
        %629 = vmatmul.f32.gmra.mxu0 %v233
        %v630 = vpop.f32.mrf.mxu0
        %v631 = vadd.f32 %v590, %v630
        %632 = vmatmul.f32.gmra.mxu0 %v242
        %v633 = vpop.f32.mrf.mxu0
        %v634 = vadd.f32 %v593, %v633
        %635 = vmatmul.f32.gmra.mxu0 %v251
        %v636 = vpop.f32.mrf.mxu0
        %v637 = vadd.f32 %v596, %v636
        %638 = vmatmul.f32.gmra.mxu0 %v260
        %v639 = vpop.f32.mrf.mxu0
        %v640 = vadd.f32 %v599, %v639
        %641 = vmatmul.f32.gmra.mxu0 %v269
        %v642 = vpop.f32.mrf.mxu0
        %v643 = vadd.f32 %v602, %v642
        %644 = vmatmul.f32.gmra.mxu0 %v278
        %v645 = vpop.f32.mrf.mxu0
        %v646 = vadd.f32 %v605, %v645
        %647 = vmatmul.f32.gmra.mxu0 %v287
        %v648 = vpop.f32.mrf.mxu0
        %v649 = vadd.f32 %v608, %v648
        %650 = vmatmul.f32.gmra.mxu0 %v296
        %v651 = vpop.f32.mrf.mxu0
        %v652 = vadd.f32 %v611, %v651
        %653 = vdwg.mxu0
        %654 = vmatpush.msra.mxu0 %v396
        %655 = vmatpush.msra.mxu0 %v395
        %656 = vmatpush.msra.mxu0 %v394
        %657 = vmatpush.msra.mxu0 %v393
        %658 = vmatpush.msra.mxu0 %v392
        %659 = vmatpush.msra.mxu0 %v391
        %660 = vmatpush.msra.mxu0 %v390
        %661 = vmatpush.msra.mxu0 %v389
        %662 = vmatpush.msra.mxu0 %v388
        %663 = vmatpush.msra.mxu0 %v387
        %664 = vmatpush.msra.mxu0 %v386
        %665 = vmatpush.msra.mxu0 %v385
        %666 = vmatpush.msra.mxu0 %v384
        %667 = vmatpush.msra.mxu0 %v383
        %668 = vmatpush.msra.mxu0 %v382
        %669 = vmatpush.msra.mxu0 %v381
        %670 = vmatmul.f32.gmra.mxu0 %v234
        %v671 = vpop.f32.mrf.mxu0
        %v672 = vadd.f32 %v631, %v671
        %673 = vmatmul.f32.gmra.mxu0 %v243
        %v674 = vpop.f32.mrf.mxu0
        %v675 = vadd.f32 %v634, %v674
        %676 = vmatmul.f32.gmra.mxu0 %v252
        %v677 = vpop.f32.mrf.mxu0
        %v678 = vadd.f32 %v637, %v677
        %679 = vmatmul.f32.gmra.mxu0 %v261
        %v680 = vpop.f32.mrf.mxu0
        %v681 = vadd.f32 %v640, %v680
        %682 = vmatmul.f32.gmra.mxu0 %v270
        %v683 = vpop.f32.mrf.mxu0
        %v684 = vadd.f32 %v643, %v683
        %685 = vmatmul.f32.gmra.mxu0 %v279
        %v686 = vpop.f32.mrf.mxu0
        %v687 = vadd.f32 %v646, %v686
        %688 = vmatmul.f32.gmra.mxu0 %v288
        %v689 = vpop.f32.mrf.mxu0
        %v690 = vadd.f32 %v649, %v689
        %691 = vmatmul.f32.gmra.mxu0 %v297
        %v692 = vpop.f32.mrf.mxu0
        %v693 = vadd.f32 %v652, %v692
        %694 = vdwg.mxu0
        %695 = vmatpush.msra.mxu0 %v412
        %696 = vmatpush.msra.mxu0 %v411
        %697 = vmatpush.msra.mxu0 %v410
        %698 = vmatpush.msra.mxu0 %v409
        %699 = vmatpush.msra.mxu0 %v408
        %700 = vmatpush.msra.mxu0 %v407
        %701 = vmatpush.msra.mxu0 %v406
        %702 = vmatpush.msra.mxu0 %v405
        %703 = vmatpush.msra.mxu0 %v404
        %704 = vmatpush.msra.mxu0 %v403
        %705 = vmatpush.msra.mxu0 %v402
        %706 = vmatpush.msra.mxu0 %v401
        %707 = vmatpush.msra.mxu0 %v400
        %708 = vmatpush.msra.mxu0 %v399
        %709 = vmatpush.msra.mxu0 %v398
        %710 = vmatpush.msra.mxu0 %v397
        %711 = vmatmul.f32.gmra.mxu0 %v235
        %v712 = vpop.f32.mrf.mxu0
        %v713 = vadd.f32 %v672, %v712
        %714 = vmatmul.f32.gmra.mxu0 %v244
        %v715 = vpop.f32.mrf.mxu0
        %v716 = vadd.f32 %v675, %v715
        %717 = vmatmul.f32.gmra.mxu0 %v253
        %v718 = vpop.f32.mrf.mxu0
        %v719 = vadd.f32 %v678, %v718
        %720 = vmatmul.f32.gmra.mxu0 %v262
        %v721 = vpop.f32.mrf.mxu0
        %v722 = vadd.f32 %v681, %v721
        %723 = vmatmul.f32.gmra.mxu0 %v271
        %v724 = vpop.f32.mrf.mxu0
        %v725 = vadd.f32 %v684, %v724
        %726 = vmatmul.f32.gmra.mxu0 %v280
        %v727 = vpop.f32.mrf.mxu0
        %v728 = vadd.f32 %v687, %v727
        %729 = vmatmul.f32.gmra.mxu0 %v289
        %v730 = vpop.f32.mrf.mxu0
        %v731 = vadd.f32 %v690, %v730
        %732 = vmatmul.f32.gmra.mxu0 %v298
        %v733 = vpop.f32.mrf.mxu0
        %v734 = vadd.f32 %v693, %v733
        %735 = vdwg.mxu0
        %736 = vmatpush.msra.mxu0 %v428
        %737 = vmatpush.msra.mxu0 %v427
        %738 = vmatpush.msra.mxu0 %v426
        %739 = vmatpush.msra.mxu0 %v425
        %740 = vmatpush.msra.mxu0 %v424
        %741 = vmatpush.msra.mxu0 %v423
        %742 = vmatpush.msra.mxu0 %v422
        %743 = vmatpush.msra.mxu0 %v421
        %744 = vmatpush.msra.mxu0 %v420
        %745 = vmatpush.msra.mxu0 %v419
        %746 = vmatpush.msra.mxu0 %v418
        %747 = vmatpush.msra.mxu0 %v417
        %748 = vmatpush.msra.mxu0 %v416
        %749 = vmatpush.msra.mxu0 %v415
        %750 = vmatpush.msra.mxu0 %v414
        %751 = vmatpush.msra.mxu0 %v413
        %752 = vmatmul.f32.gmra.mxu0 %v236
        %v753 = vpop.f32.mrf.mxu0
        %v754 = vadd.f32 %v713, %v753
        %755 = vmatmul.f32.gmra.mxu0 %v245
        %v756 = vpop.f32.mrf.mxu0
        %v757 = vadd.f32 %v716, %v756
        %758 = vmatmul.f32.gmra.mxu0 %v254
        %v759 = vpop.f32.mrf.mxu0
        %v760 = vadd.f32 %v719, %v759
        %761 = vmatmul.f32.gmra.mxu0 %v263
        %v762 = vpop.f32.mrf.mxu0
        %v763 = vadd.f32 %v722, %v762
        %764 = vmatmul.f32.gmra.mxu0 %v272
        %v765 = vpop.f32.mrf.mxu0
        %v766 = vadd.f32 %v725, %v765
        %767 = vmatmul.f32.gmra.mxu0 %v281
        %v768 = vpop.f32.mrf.mxu0
        %v769 = vadd.f32 %v728, %v768
        %770 = vmatmul.f32.gmra.mxu0 %v290
        %v771 = vpop.f32.mrf.mxu0
        %v772 = vadd.f32 %v731, %v771
        %773 = vmatmul.f32.gmra.mxu0 %v299
        %v774 = vpop.f32.mrf.mxu0
        %v775 = vadd.f32 %v734, %v774
        %776 = vdwg.mxu0
        %777 = vmatpush.msra.mxu0 %v444
        %778 = vmatpush.msra.mxu0 %v443
        %779 = vmatpush.msra.mxu0 %v442
        %780 = vmatpush.msra.mxu0 %v441
        %781 = vmatpush.msra.mxu0 %v440
        %782 = vmatpush.msra.mxu0 %v439
        %783 = vmatpush.msra.mxu0 %v438
        %784 = vmatpush.msra.mxu0 %v437
        %785 = vmatpush.msra.mxu0 %v436
        %786 = vmatpush.msra.mxu0 %v435
        %787 = vmatpush.msra.mxu0 %v434
        %788 = vmatpush.msra.mxu0 %v433
        %789 = vmatpush.msra.mxu0 %v432
        %790 = vmatpush.msra.mxu0 %v431
        %791 = vmatpush.msra.mxu0 %v430
        %792 = vmatpush.msra.mxu0 %v429
        %793 = vmatmul.f32.gmra.mxu0 %v237
        %v794 = vpop.f32.mrf.mxu0
        %v795 = vadd.f32 %v754, %v794
        %796 = vmatmul.f32.gmra.mxu0 %v246
        %v797 = vpop.f32.mrf.mxu0
        %v798 = vadd.f32 %v757, %v797
        %799 = vmatmul.f32.gmra.mxu0 %v255
        %v800 = vpop.f32.mrf.mxu0
        %v801 = vadd.f32 %v760, %v800
        %802 = vmatmul.f32.gmra.mxu0 %v264
        %v803 = vpop.f32.mrf.mxu0
        %v804 = vadd.f32 %v763, %v803
        %805 = vmatmul.f32.gmra.mxu0 %v273
        %v806 = vpop.f32.mrf.mxu0
        %v807 = vadd.f32 %v766, %v806
        %808 = vmatmul.f32.gmra.mxu0 %v282
        %v809 = vpop.f32.mrf.mxu0
        %v810 = vadd.f32 %v769, %v809
        %811 = vmatmul.f32.gmra.mxu0 %v291
        %v812 = vpop.f32.mrf.mxu0
        %v813 = vadd.f32 %v772, %v812
        %814 = vmatmul.f32.gmra.mxu0 %v300
        %v815 = vpop.f32.mrf.mxu0
        %v816 = vadd.f32 %v775, %v815
        %817 = vdwg.mxu0
        %818 = vst [vmem:[%s226] sm:$0xff] %v795
        %819 = vst [vmem:[%s226 + $0x8] sm:$0xff] %v798
        %820 = vst [vmem:[%s226 + $0x10] sm:$0xff] %v801
        %821 = vst [vmem:[%s226 + $0x18] sm:$0xff] %v804
        %822 = vst [vmem:[%s226 + $0x20] sm:$0xff] %v807
        %823 = vst [vmem:[%s226 + $0x28] sm:$0xff] %v810
        %824 = vst [vmem:[%s226 + $0x30] sm:$0xff] %v813
        %825 = vst [vmem:[%s226 + $0x38] sm:$0xff] %v816
        %s826 = sand.u32 %s113, 1
        %s827 = scalar_lea.sflag [#allocation4], %s826
        %s828 = sand.u32 %s113, 1
        %s829 = smul.addr %s828, 64
        %s830 = scalar_lea.vmem [#allocation7], %s829
        // Predicated region
        $region41: #{tpu_custom_call.1} parent=31 // pred_check
          %p831 = pneg %p123
        $region42: #{tpu_custom_call.1} parent=31 // pred_check_branch
          %833 = sbr.rel (%p831) target = $region44
        $region43: #{tpu_custom_call.1} parent=31 // pred_region
          %s834 = smul.u32 8, %s26
          %836 = vsyncadd %s827, 0
          %s837 = smul.addr %s25, 8
          %s838 = sadd.s32 %s834, %s837
          %s839 = smul.addr %s838, 8
          %s840 = scalar_lea.hbm %s3, %s839
          %s841 = sshll.u32 %s830, 4
          %s842 = int_to_ptr.vmem [resolvable:$true] %s841
          %s843 = sshll.u32 %s840, 4
          %s844 = int_to_ptr.hbm [resolvable:$true] %s843
          %849 = dma.vmem_to_hbm [thread:$0]  %s842, 1024, %s844, %s827, 128, 128, 8
        $region44: #{tpu_custom_call.1} parent=31 // pred_fallthru
          _
      $region32: #{tpu_custom_call.1} parent=5 // pred_fallthru
        _
      %p850 = scmp.le.s32.totalorder 2, %s16
      // Predicated region
      $region45: #{tpu_custom_call.1} parent=5 // pred_check
        %p851 = pneg %p850
      $region46: #{tpu_custom_call.1} parent=5 // pred_check_branch
        %853 = sbr.rel (%p851) target = $region48
      $region47: #{tpu_custom_call.1} parent=5 // pred_region
        %s854 = ssub.s32 %s16, 2
        // Predicated region
        $region49: #{tpu_custom_call.1} parent=47 // pred_check
          %p855 = pneg %p129
        $region50: #{tpu_custom_call.1} parent=47 // pred_check_branch
          %857 = sbr.rel (%p855) target = $region52
        $region51: #{tpu_custom_call.1} parent=47 // pred_region
          %s858 = sand.u32 %s114, 1
          %s859 = scalar_lea.sflag [#allocation4], %s858
          %s860 = sand.u32 %s114, 1
          %s861 = smul.addr %s860, 64
          %s862 = scalar_lea.vmem [#allocation7], %s861
          %864 = dma.done %s859, 1024
        $region52: #{tpu_custom_call.1} parent=47 // pred_fallthru
          _
      $region48: #{tpu_custom_call.1} parent=5 // pred_fallthru
        _
    $region6: #{tpu_custom_call.1} parent=1 // loop_footer
      %s20 = sadd.s32 1, %s16
    $region7: #{tpu_custom_call.1} parent=1 // loop_footer_branch
      %15 = sbr.rel target = $region3
    $region8: #{tpu_custom_call.1} parent=1 // loop_exit
      _
    %865 = vsyncpa [#allocation3], 1
    %s866 = scalar_lea.sflag [#allocation3], 1
    %867 = vsyncpa %s866, 1
    %868 = vsyncpa [#allocation6], 1
    %869 = vsyncpa [#allocation4], 1
    %s870 = scalar_lea.sflag [#allocation4], 1
    %871 = vsyncpa %s870, 1

</llo_original>
